<compile_context>
chip_gen: v6e
topology: v6e:2x2x1
jax: 0.10.0
libtpu: 0.0.40
codegen_flags: <defaults>
</compile_context>

<pallas_src>
import functools

import jax
import jax.numpy as jnp
from jax import lax
from jax.experimental import pallas as pl
from jax.experimental.pallas import tpu as pltpu

LANES = 128
SUBLANES = 8


def _pad_lanes(W):
    """Halo width (>= W+1), rounded up to a full lane tile."""
    return ((W + 1 + LANES - 1) // LANES) * LANES


def merge_block_kernel(x_ref, cmask_ref, wdw_ref, sdw_ref, bdw_ref,
                       wsep_ref, ssep_ref, bsep_ref, o_ref, xpad_ref,
                       *, W, S, TS, PADL, n_tiles):
    """Fused depthwise 3x3 conv + BN + ReLU -> 1x1 conv + BN + ReLU.

    x_ref    : (1, GC, S)       G images folded into rows, S = H*W (resident/group)
    cmask_ref: (2, TS)          column-border masks (row 0: dw=-1, row 1: dw=+1)
    wdw_ref  : (GC, 9)          depthwise weights, tap index = (dh+1)*3 + (dw+1)
    sdw_ref  : (GC, 1)          fused BN scale (depthwise stage)
    bdw_ref  : (GC, 1)          fused BN bias  (depthwise stage)
    wsep_ref : (GCout, GC)      block-diagonal pointwise (1x1) weights
    ssep_ref : (GCout, 1)       fused BN scale (pointwise stage)
    bsep_ref : (GCout, 1)       fused BN bias  (pointwise stage)
    o_ref    : (1, GCout, TS)   output tile
    xpad_ref : (n_tiles, GC, TS + 2*PADL) zero-padded haloed slabs (scratch)
    """
    GC = x_ref.shape[1]
    TSP = TS + 2 * PADL
    t = pl.program_id(1)

    # ---- once per image group: build zero-padded, haloed per-tile slabs -----
    # Slab ti holds x[:, ti*TS - PADL : ti*TS + TS + PADL] with zeros outside
    # the image, so every tap below is a *static* slice and the vertical
    # (row) conv border is handled by the zero padding — no rolls, no row masks.
    @pl.when(t == 0)
    def _fill_slabs():
        for ti in range(n_tiles):                      # static unroll
            lo = ti * TS - PADL                        # slab start, flat coords
            src_lo, src_hi = max(lo, 0), min(lo + TSP, S)
            dst_lo, dst_hi = src_lo - lo, src_hi - lo
            if dst_lo > 0:
                xpad_ref[ti, :, :dst_lo] = jnp.zeros((GC, dst_lo), xpad_ref.dtype)
            xpad_ref[ti, :, dst_lo:dst_hi] = (
                x_ref[0, :, src_lo:src_hi].astype(xpad_ref.dtype))
            if dst_hi < TSP:
                xpad_ref[ti, :, dst_hi:] = jnp.zeros((GC, TSP - dst_hi),
                                                     xpad_ref.dtype)

    # Load this tile's haloed slab once; all 9 taps are static slices of it.
    slab = xpad_ref[0] if n_tiles == 1 else xpad_ref[t]          # (GC, TSP)
    wdw = wdw_ref[...]                                           # (GC, 9)

    # ---- depthwise 3x3, factorized by column offset -------------------------
    # acc = sum_dw colmask_dw * sum_dh w[dh,dw] * slab[:, shift(dh,dw)]
    # => 11 VPU muls + 8 adds per element (vs. 17 muls + 9 adds + 8 rolls before)
    acc = None
    for dw in (-1, 0, 1):
        q = None
        for dh in (-1, 0, 1):
            k = (dh + 1) * 3 + (dw + 1)
            start = PADL + dh * W + dw                           # static offset
            term = slab[:, start:start + TS] * wdw[:, k:k + 1]
            q = term if q is None else q + term
        if dw != 0:
            # zero the taps that would cross the left/right image border
            m = cmask_ref[0:1, :] if dw == -1 else cmask_ref[1:2, :]
            q = q * m
        acc = q if acc is None else acc + q

    # ---- BN + ReLU (depthwise stage) ----------------------------------------
    y = jnp.maximum(acc * sdw_ref[...] + bdw_ref[...], 0.0)      # (GC, TS)

    # ---- pointwise 1x1 conv on the MXU --------------------------------------
    # Block-diagonal weight => one matmul covers all G folded images.
    z = jnp.dot(wsep_ref[...], y,
                preferred_element_type=jnp.float32,
                precision=lax.Precision.HIGHEST)                 # (GCout, TS)

    # ---- BN + ReLU (pointwise stage) ----------------------------------------
    z = jnp.maximum(z * ssep_ref[...] + bsep_ref[...], 0.0)
    o_ref[0] = z.astype(o_ref.dtype)


def _pick_group(N, C, sublanes=SUBLANES):
    """Images folded per grid step so the row (sublane) axis holds >= 8 rows."""
    if C >= sublanes:
        return 1
    g_max = min(N, max(1, sublanes // C))
    for g in range(g_max, 0, -1):
        if N % g == 0:
            return g
    return 1


def _vmem_estimate(GC, GCout, S, W, TS):
    """f32 bytes actually resident in VMEM for one grid step (review item 7)."""
    padl = _pad_lanes(W)
    tsp = TS + 2 * padl
    n_tiles = S // TS
    return 4 * (2 * GC * S                      # resident input block (x2 pipeline bufs)
                + 2 * 2 * TS                    # column-mask block (x2)
                + 2 * GCout * TS                # output block (x2)
                + n_tiles * GC * tsp            # padded per-tile slab scratch
                + (5 * GC + 3 * GCout) * TS     # in-kernel temporaries (taps/q/acc/y/z)
                + 2 * (GC * 12 + GCout * (GC + 2)))   # small parameter blocks


def _choose_spatial_tile(S, W, GC, GCout, budget_bytes=24 * 2**20, max_tile=None):
    """Largest lane-aligned divisor of S whose real VMEM footprint fits budget."""
    if S % LANES != 0:
        # TODO(synk): pad the flattened spatial axis to a multiple of 128 lanes
        # instead of emitting a lane-misaligned (masked-store) output block.
        return S
    cands = [ts for ts in range(S, LANES - 1, -LANES) if S % ts == 0]
    if max_tile is not None:
        cands = [ts for ts in cands if ts <= max_tile] or [cands[-1]]
    for ts in cands:
        if _vmem_estimate(GC, GCout, S, W, ts) <= budget_bytes:
            return ts
    return cands[-1]


def merge_block_forward(x_nchw, params, *, max_spatial_tile=None):
    """NCHW in / NCHW out, matching the PyTorch module interface (eval mode)."""
    N, C, H, W = x_nchw.shape
    Cout = params["wsep_t"].shape[0]
    assert params["wdw_c9"].shape[0] == C, "depthwise assumes inplanes == temp_planes"
    S = H * W

    # Fold G images per grid step so depthwise/BN/ReLU use full 8-row vregs.
    G = _pick_group(N, C)
    n_groups = N // G
    GC, GCout = G * C, G * Cout

    TS = _choose_spatial_tile(S, W, GC, GCout, max_tile=max_spatial_tile)
    n_tiles = S // TS
    PADL = _pad_lanes(W)
    TSP = TS + 2 * PADL

    # Free metadata reshape: (N, C, H, W) -> (n_groups, G*C, H*W).
    x_grp = x_nchw.reshape(n_groups, GC, S)

    # Column-border masks (one per horizontal tap direction).  Vertical borders
    # are handled by the zero-padded slabs inside the kernel.
    w_idx = jnp.arange(S, dtype=jnp.int32) % W
    cmask = jnp.stack([(w_idx != 0), (w_idx != W - 1)], axis=0).astype(jnp.float32)

    # Per-row (grouped) parameters.
    wdw = jnp.tile(params["wdw_c9"], (G, 1))                     # (GC, 9)
    sdw = jnp.tile(params["scale_dw"], (G, 1))                   # (GC, 1)
    bdw = jnp.tile(params["bias_dw"], (G, 1))
    # Block-diagonal pointwise weight: one MXU matmul covers all G images.
    wsep = jnp.kron(jnp.eye(G, dtype=jnp.float32), params["wsep_t"])   # (GCout, GC)
    ssep = jnp.tile(params["scale_sep"], (G, 1))                 # (GCout, 1)
    bsep = jnp.tile(params["bias_sep"], (G, 1))

    est = _vmem_estimate(GC, GCout, S, W, TS)
    vmem_limit = int(min(40 * 2**20, max(16 * 2**20, int(1.3 * est) + (2 << 20))))

    kernel = functools.partial(merge_block_kernel, W=W, S=S, TS=TS,
                               PADL=PADL, n_tiles=n_tiles)

    out_grp = pl.pallas_call(
        kernel,
        out_shape=jax.ShapeDtypeStruct((n_groups, GCout, S), jnp.float32),
        grid_spec=pltpu.PrefetchScalarGridSpec(
            num_scalar_prefetch=0,
            grid=(n_groups, n_tiles),
            in_specs=[
                pl.BlockSpec((1, GC, S), lambda g, t: (g, 0, 0)),  # resident per group
                pl.BlockSpec((2, TS), lambda g, t: (0, t)),
                pl.BlockSpec((GC, 9), lambda g, t: (0, 0)),
                pl.BlockSpec((GC, 1), lambda g, t: (0, 0)),
                pl.BlockSpec((GC, 1), lambda g, t: (0, 0)),
                pl.BlockSpec((GCout, GC), lambda g, t: (0, 0)),
                pl.BlockSpec((GCout, 1), lambda g, t: (0, 0)),
                pl.BlockSpec((GCout, 1), lambda g, t: (0, 0)),
            ],
            out_specs=pl.BlockSpec((1, GCout, TS), lambda g, t: (g, 0, t)),
            scratch_shapes=[pltpu.VMEM((n_tiles, GC, TSP), jnp.float32)],
        ),
        compiler_params=pltpu.CompilerParams(
            # tile axis is "arbitrary": the per-group slab scratch is filled at t == 0
            dimension_semantics=("parallel", "arbitrary"),
            vmem_limit_bytes=vmem_limit),
    )(x_grp, cmask, wdw, sdw, bdw, wsep, ssep, bsep)

    # Free metadata reshape back to NCHW.
    return out_grp.reshape(N, Cout, H, W)


def make_params(key, inplanes, planes, eps=1e-5):
    """Deterministic synthetic parameters matching MergeBlock.__init__ shapes
    (inplanes == temp_planes, ksize1=3, ksize2=1, stride=1, plain ReLU)."""
    ks = jax.random.split(key, 10)
    C, Cout = inplanes, planes

    wdw_oihw = jax.random.normal(ks[0], (C, 1, 3, 3), jnp.float32) * 0.2
    wsep_oihw = jax.random.normal(ks[1], (Cout, C, 1, 1), jnp.float32) * 0.2

    g_dw = 1.0 + 0.1 * jax.random.uniform(ks[2], (C,), jnp.float32)
    b_dw = 0.05 * jax.random.normal(ks[3], (C,), jnp.float32)
    m_dw = 0.1 * jax.random.normal(ks[4], (C,), jnp.float32)
    v_dw = 0.5 + jax.random.uniform(ks[5], (C,), jnp.float32)

    g_sep = 1.0 + 0.1 * jax.random.uniform(ks[6], (Cout,), jnp.float32)
    b_sep = 0.05 * jax.random.normal(ks[7], (Cout,), jnp.float32)
    m_sep = 0.1 * jax.random.normal(ks[8], (Cout,), jnp.float32)
    v_sep = 0.5 + jax.random.uniform(ks[9], (Cout,), jnp.float32)

    scale_dw = g_dw / jnp.sqrt(v_dw + eps)
    bias_dw = b_dw - m_dw * scale_dw
    scale_sep = g_sep / jnp.sqrt(v_sep + eps)
    bias_sep = b_sep - m_sep * scale_sep

    return {
        "wdw_oihw": wdw_oihw,
        "wsep_oihw": wsep_oihw,
        "wdw_c9": wdw_oihw.reshape(C, 9),            # (C, 9), tap = kh*3 + kw
        "wsep_t": wsep_oihw[:, :, 0, 0],             # (Cout, C)
        "scale_dw": scale_dw.reshape(C, 1),
        "bias_dw": bias_dw.reshape(C, 1),
        "scale_sep": scale_sep.reshape(Cout, 1),
        "bias_sep": bias_sep.reshape(Cout, 1),
    }


def reference_forward(x_nchw, params):
    """Pure-JAX reference (matches PyTorch eval-mode MergeBlock), f32-accurate."""
    C = x_nchw.shape[1]
    out = lax.conv_general_dilated(
        x_nchw, params["wdw_oihw"], window_strides=(1, 1),
        padding=((1, 1), (1, 1)), feature_group_count=C,
        dimension_numbers=("NCHW", "OIHW", "NCHW"),
        precision=lax.Precision.HIGHEST)
    out = out * params["scale_dw"].reshape(1, C, 1, 1) \
        + params["bias_dw"].reshape(1, C, 1, 1)
    out = jnp.maximum(out, 0.0)
    out = lax.conv_general_dilated(
        out, params["wsep_oihw"], window_strides=(1, 1), padding="VALID",
        dimension_numbers=("NCHW", "OIHW", "NCHW"),
        precision=lax.Precision.HIGHEST)
    Cout = out.shape[1]
    out = out * params["scale_sep"].reshape(1, Cout, 1, 1) \
        + params["bias_sep"].reshape(1, Cout, 1, 1)
    out = jnp.maximum(out, 0.0)
    return out


if __name__ == "__main__":
    key = jax.random.PRNGKey(0)

    configs = [
        # (N, C, Cout, H, W, max_spatial_tile)
        (2, 4, 8, 16, 16, None),   # grid (1, 1): batch folded into sublanes, untiled
        (2, 4, 8, 32, 32, 512),    # grid (1, 2): exercises the spatially tiled path
        (3, 8, 12, 16, 16, None),  # grid (3, 1): multi-group, G == 1 (C fills sublanes)
    ]
    for idx, (N, C, Cout, H, W, max_ts) in enumerate(configs):
        kx, kp, key = jax.random.split(key, 3)
        x = jax.random.normal(kx, (N, C, H, W), jnp.float32)
        params = make_params(kp, inplanes=C, planes=Cout)

        out = jax.block_until_ready(
            merge_block_forward(x, params, max_spatial_tile=max_ts))
        ref = jax.block_until_ready(reference_forward(x, params))

        assert out.shape == ref.shape == (N, Cout, H, W), (idx, out.shape)
        err = float(jnp.max(jnp.abs(out - ref)))
        assert jnp.allclose(out, ref, atol=1e-3, rtol=1e-3), (idx, err)

    print("KERNEL_OK")
</pallas_src>

<mosaic_0001>
module attributes {stable_mosaic.version = 11 : i64} {
  func.func @merge_block_kernel(%arg0: i32, %arg1: i32, %arg2: memref<1x8x256xf32, #tpu.memory_space<vmem>>, %arg3: memref<2x256xf32, #tpu.memory_space<vmem>>, %arg4: memref<8x9xf32, #tpu.memory_space<vmem>>, %arg5: memref<8x1xf32, #tpu.memory_space<vmem>>, %arg6: memref<8x1xf32, #tpu.memory_space<vmem>>, %arg7: memref<16x8xf32, #tpu.memory_space<vmem>>, %arg8: memref<16x1xf32, #tpu.memory_space<vmem>>, %arg9: memref<16x1xf32, #tpu.memory_space<vmem>>, %arg10: memref<1x16x256xf32, #tpu.memory_space<vmem>>, %arg11: memref<1x8x512xf32, #tpu.memory_space<vmem>>) attributes {dimension_semantics = [#tpu.dimension_semantics<parallel>, #tpu.dimension_semantics<arbitrary>], iteration_bounds = array<i64: 1, 1>, scalar_prefetch = 0 : i64, scratch_operands = 1 : i64, tpu.core_type = #tpu.core_type<tc>, window_params = [{transform_indices = @transform_0, window_bounds = array<i64: 1, 8, 256>}, {transform_indices = @transform_1, window_bounds = array<i64: 2, 256>}, {pipeline_mode = #tpu.pipeline_mode<synchronous>, transform_indices = @transform_2, window_bounds = array<i64: 8, 9>}, {pipeline_mode = #tpu.pipeline_mode<synchronous>, transform_indices = @transform_3, window_bounds = array<i64: 8, 1>}, {pipeline_mode = #tpu.pipeline_mode<synchronous>, transform_indices = @transform_4, window_bounds = array<i64: 8, 1>}, {pipeline_mode = #tpu.pipeline_mode<synchronous>, transform_indices = @transform_5, window_bounds = array<i64: 16, 8>}, {pipeline_mode = #tpu.pipeline_mode<synchronous>, transform_indices = @transform_6, window_bounds = array<i64: 16, 1>}, {pipeline_mode = #tpu.pipeline_mode<synchronous>, transform_indices = @transform_7, window_bounds = array<i64: 16, 1>}, {transform_indices = @transform_8, window_bounds = array<i64: 1, 16, 256>}]} {
    %c0_i32 = arith.constant 0 : i32
    %0 = arith.cmpi eq, %arg1, %c0_i32 : i32
    %1 = arith.extui %0 : i1 to i32
    %c0_i32_0 = arith.constant 0 : i32
    %2 = arith.cmpi ne, %1, %c0_i32_0 : i32
    scf.if %2 {
      %cst_23 = arith.constant 0.000000e+00 : f32
      %77 = vector.broadcast %cst_23 : f32 to vector<8x128xf32>
      %c0_24 = arith.constant 0 : index
      %c0_25 = arith.constant 0 : index
      %c0_26 = arith.constant 0 : index
      %78 = vector.load %arg11[%c0_24, %c0_25, %c0_26] : memref<1x8x512xf32, #tpu.memory_space<vmem>>, vector<1x8x128xf32>
      %79 = vector.shape_cast %78 : vector<1x8x128xf32> to vector<8x128xf32>
      %80 = vector.shape_cast %77 : vector<8x128xf32> to vector<1x8x128xf32>
      tpu.vector_store %arg11[%c0_24, %c0_25, %c0_26], %80 {strides = array<i32>} : memref<1x8x512xf32, #tpu.memory_space<vmem>>, vector<1x8x128xf32>,
      %c0_27 = arith.constant 0 : index
      %c0_28 = arith.constant 0 : index
      %c0_29 = arith.constant 0 : index
      %81 = vector.load %arg2[%c0_27, %c0_28, %c0_29] : memref<1x8x256xf32, #tpu.memory_space<vmem>>, vector<1x8x256xf32>
      %82 = vector.shape_cast %81 : vector<1x8x256xf32> to vector<8x256xf32>
      %c0_30 = arith.constant 0 : index
      %c0_31 = arith.constant 0 : index
      %c128 = arith.constant 128 : index
      %83 = vector.load %arg11[%c0_30, %c0_31, %c128] : memref<1x8x512xf32, #tpu.memory_space<vmem>>, vector<1x8x256xf32>
      %84 = vector.shape_cast %83 : vector<1x8x256xf32> to vector<8x256xf32>
      %85 = vector.shape_cast %82 : vector<8x256xf32> to vector<1x8x256xf32>
      tpu.vector_store %arg11[%c0_30, %c0_31, %c128], %85 {strides = array<i32>} : memref<1x8x512xf32, #tpu.memory_space<vmem>>, vector<1x8x256xf32>,
      %cst_32 = arith.constant 0.000000e+00 : f32
      %86 = vector.broadcast %cst_32 : f32 to vector<8x128xf32>
      %c0_33 = arith.constant 0 : index
      %c0_34 = arith.constant 0 : index
      %c384 = arith.constant 384 : index
      %87 = vector.load %arg11[%c0_33, %c0_34, %c384] : memref<1x8x512xf32, #tpu.memory_space<vmem>>, vector<1x8x128xf32>
      %88 = vector.shape_cast %87 : vector<1x8x128xf32> to vector<8x128xf32>
      %89 = vector.shape_cast %86 : vector<8x128xf32> to vector<1x8x128xf32>
      tpu.vector_store %arg11[%c0_33, %c0_34, %c384], %89 {strides = array<i32>} : memref<1x8x512xf32, #tpu.memory_space<vmem>>, vector<1x8x128xf32>,
    } else {
    }
    %c0 = arith.constant 0 : index
    %c0_1 = arith.constant 0 : index
    %c0_2 = arith.constant 0 : index
    %3 = vector.load %arg11[%c0, %c0_1, %c0_2] : memref<1x8x512xf32, #tpu.memory_space<vmem>>, vector<1x8x512xf32>
    %4 = vector.shape_cast %3 : vector<1x8x512xf32> to vector<8x512xf32>
    %c0_3 = arith.constant 0 : index
    %c0_4 = arith.constant 0 : index
    %5 = vector.load %arg4[%c0_3, %c0_4] : memref<8x9xf32, #tpu.memory_space<vmem>>, vector<8x9xf32>
    %6 = vector.extract_strided_slice %4 {offsets = [0, 111], sizes = [8, 256], strides = [1, 1]} : vector<8x512xf32> to vector<8x256xf32>
    %7 = vector.extract_strided_slice %5 {offsets = [0, 0], sizes = [8, 1], strides = [1, 1]} : vector<8x9xf32> to vector<8x1xf32>
    %8 = vector.broadcast %7 : vector<8x1xf32> to vector<8x256xf32>
    %9 = arith.mulf %6, %8 : vector<8x256xf32>
    %10 = vector.extract_strided_slice %4 {offsets = [0, 127], sizes = [8, 256], strides = [1, 1]} : vector<8x512xf32> to vector<8x256xf32>
    %11 = vector.extract_strided_slice %5 {offsets = [0, 3], sizes = [8, 1], strides = [1, 1]} : vector<8x9xf32> to vector<8x1xf32>
    %12 = vector.broadcast %11 : vector<8x1xf32> to vector<8x256xf32>
    %13 = arith.mulf %10, %12 : vector<8x256xf32>
    %14 = arith.addf %9, %13 : vector<8x256xf32>
    %15 = vector.extract_strided_slice %4 {offsets = [0, 143], sizes = [8, 256], strides = [1, 1]} : vector<8x512xf32> to vector<8x256xf32>
    %16 = vector.extract_strided_slice %5 {offsets = [0, 6], sizes = [8, 1], strides = [1, 1]} : vector<8x9xf32> to vector<8x1xf32>
    %17 = vector.broadcast %16 : vector<8x1xf32> to vector<8x256xf32>
    %18 = arith.mulf %15, %17 : vector<8x256xf32>
    %19 = arith.addf %14, %18 : vector<8x256xf32>
    %c0_5 = arith.constant 0 : index
    %c0_6 = arith.constant 0 : index
    %20 = vector.load %arg3[%c0_5, %c0_6] : memref<2x256xf32, #tpu.memory_space<vmem>>, vector<1x256xf32>
    %21 = vector.broadcast %20 : vector<1x256xf32> to vector<8x256xf32>
    %22 = arith.mulf %19, %21 : vector<8x256xf32>
    %23 = vector.extract_strided_slice %4 {offsets = [0, 112], sizes = [8, 256], strides = [1, 1]} : vector<8x512xf32> to vector<8x256xf32>
    %24 = vector.extract_strided_slice %5 {offsets = [0, 1], sizes = [8, 1], strides = [1, 1]} : vector<8x9xf32> to vector<8x1xf32>
    %25 = vector.broadcast %24 : vector<8x1xf32> to vector<8x256xf32>
    %26 = arith.mulf %23, %25 : vector<8x256xf32>
    %27 = vector.extract_strided_slice %4 {offsets = [0, 128], sizes = [8, 256], strides = [1, 1]} : vector<8x512xf32> to vector<8x256xf32>
    %28 = vector.extract_strided_slice %5 {offsets = [0, 4], sizes = [8, 1], strides = [1, 1]} : vector<8x9xf32> to vector<8x1xf32>
    %29 = vector.broadcast %28 : vector<8x1xf32> to vector<8x256xf32>
    %30 = arith.mulf %27, %29 : vector<8x256xf32>
    %31 = arith.addf %26, %30 : vector<8x256xf32>
    %32 = vector.extract_strided_slice %4 {offsets = [0, 144], sizes = [8, 256], strides = [1, 1]} : vector<8x512xf32> to vector<8x256xf32>
    %33 = vector.extract_strided_slice %5 {offsets = [0, 7], sizes = [8, 1], strides = [1, 1]} : vector<8x9xf32> to vector<8x1xf32>
    %34 = vector.broadcast %33 : vector<8x1xf32> to vector<8x256xf32>
    %35 = arith.mulf %32, %34 : vector<8x256xf32>
    %36 = arith.addf %31, %35 : vector<8x256xf32>
    %37 = arith.addf %22, %36 : vector<8x256xf32>
    %38 = vector.extract_strided_slice %4 {offsets = [0, 113], sizes = [8, 256], strides = [1, 1]} : vector<8x512xf32> to vector<8x256xf32>
    %39 = vector.extract_strided_slice %5 {offsets = [0, 2], sizes = [8, 1], strides = [1, 1]} : vector<8x9xf32> to vector<8x1xf32>
    %40 = vector.broadcast %39 : vector<8x1xf32> to vector<8x256xf32>
    %41 = arith.mulf %38, %40 : vector<8x256xf32>
    %42 = vector.extract_strided_slice %4 {offsets = [0, 129], sizes = [8, 256], strides = [1, 1]} : vector<8x512xf32> to vector<8x256xf32>
    %43 = vector.extract_strided_slice %5 {offsets = [0, 5], sizes = [8, 1], strides = [1, 1]} : vector<8x9xf32> to vector<8x1xf32>
    %44 = vector.broadcast %43 : vector<8x1xf32> to vector<8x256xf32>
    %45 = arith.mulf %42, %44 : vector<8x256xf32>
    %46 = arith.addf %41, %45 : vector<8x256xf32>
    %47 = vector.extract_strided_slice %4 {offsets = [0, 145], sizes = [8, 256], strides = [1, 1]} : vector<8x512xf32> to vector<8x256xf32>
    %48 = vector.extract_strided_slice %5 {offsets = [0, 8], sizes = [8, 1], strides = [1, 1]} : vector<8x9xf32> to vector<8x1xf32>
    %49 = vector.broadcast %48 : vector<8x1xf32> to vector<8x256xf32>
    %50 = arith.mulf %47, %49 : vector<8x256xf32>
    %51 = arith.addf %46, %50 : vector<8x256xf32>
    %c1 = arith.constant 1 : index
    %c0_7 = arith.constant 0 : index
    %52 = vector.load %arg3[%c1, %c0_7] : memref<2x256xf32, #tpu.memory_space<vmem>>, vector<1x256xf32>
    %53 = vector.broadcast %52 : vector<1x256xf32> to vector<8x256xf32>
    %54 = arith.mulf %51, %53 : vector<8x256xf32>
    %55 = arith.addf %37, %54 : vector<8x256xf32>
    %c0_8 = arith.constant 0 : index
    %c0_9 = arith.constant 0 : index
    %56 = vector.load %arg5[%c0_8, %c0_9] : memref<8x1xf32, #tpu.memory_space<vmem>>, vector<8x1xf32>
    %57 = vector.broadcast %56 : vector<8x1xf32> to vector<8x256xf32>
    %58 = arith.mulf %55, %57 : vector<8x256xf32>
    %c0_10 = arith.constant 0 : index
    %c0_11 = arith.constant 0 : index
    %59 = vector.load %arg6[%c0_10, %c0_11] : memref<8x1xf32, #tpu.memory_space<vmem>>, vector<8x1xf32>
    %60 = vector.broadcast %59 : vector<8x1xf32> to vector<8x256xf32>
    %61 = arith.addf %58, %60 : vector<8x256xf32>
    %cst = arith.constant 0.000000e+00 : f32
    %62 = vector.broadcast %cst : f32 to vector<8x256xf32>
    %63 = arith.maximumf %61, %62 : vector<8x256xf32>
    %c0_12 = arith.constant 0 : index
    %c0_13 = arith.constant 0 : index
    %64 = vector.load %arg7[%c0_12, %c0_13] : memref<16x8xf32, #tpu.memory_space<vmem>>, vector<16x8xf32>
    %cst_14 = arith.constant dense<0.000000e+00> : vector<16x256xf32>
    %65 = tpu.matmul %64, %63, %cst_14 {dimension_numbers = #tpu.dot_dimension_numbers<[1], [0], [0], [1], [0, 0, 1, 1], [], []>, precision = #tpu.contract_precision<fp32>} : vector<16x8xf32>, vector<8x256xf32>, vector<16x256xf32> -> vector<16x256xf32>
    %c0_15 = arith.constant 0 : index
    %c0_16 = arith.constant 0 : index
    %66 = vector.load %arg8[%c0_15, %c0_16] : memref<16x1xf32, #tpu.memory_space<vmem>>, vector<16x1xf32>
    %67 = vector.broadcast %66 : vector<16x1xf32> to vector<16x256xf32>
    %68 = arith.mulf %65, %67 : vector<16x256xf32>
    %c0_17 = arith.constant 0 : index
    %c0_18 = arith.constant 0 : index
    %69 = vector.load %arg9[%c0_17, %c0_18] : memref<16x1xf32, #tpu.memory_space<vmem>>, vector<16x1xf32>
    %70 = vector.broadcast %69 : vector<16x1xf32> to vector<16x256xf32>
    %71 = arith.addf %68, %70 : vector<16x256xf32>
    %cst_19 = arith.constant 0.000000e+00 : f32
    %72 = vector.broadcast %cst_19 : f32 to vector<16x256xf32>
    %73 = arith.maximumf %71, %72 : vector<16x256xf32>
    %c0_20 = arith.constant 0 : index
    %c0_21 = arith.constant 0 : index
    %c0_22 = arith.constant 0 : index
    %74 = vector.load %arg10[%c0_20, %c0_21, %c0_22] : memref<1x16x256xf32, #tpu.memory_space<vmem>>, vector<1x16x256xf32>
    %75 = vector.shape_cast %74 : vector<1x16x256xf32> to vector<16x256xf32>
    %76 = vector.shape_cast %73 : vector<16x256xf32> to vector<1x16x256xf32>
    tpu.vector_store %arg10[%c0_20, %c0_21, %c0_22], %76 {strides = array<i32>} : memref<1x16x256xf32, #tpu.memory_space<vmem>>, vector<1x16x256xf32>,
    return
  }
  func.func @transform_0(%arg0: i32, %arg1: i32) -> (i32, i32, i32) {
    %c0_i32 = arith.constant 0 : i32
    %c0_i32_0 = arith.constant 0 : i32
    %c0_i32_1 = arith.constant 0 : i32
    return %arg0, %c0_i32, %c0_i32_0 : i32, i32, i32
  }
  func.func @transform_1(%arg0: i32, %arg1: i32) -> (i32, i32) {
    %c0_i32 = arith.constant 0 : i32
    %c0_i32_0 = arith.constant 0 : i32
    return %c0_i32, %arg1 : i32, i32
  }
  func.func @transform_2(%arg0: i32, %arg1: i32) -> (i32, i32) {
    %c0_i32 = arith.constant 0 : i32
    %c0_i32_0 = arith.constant 0 : i32
    %c0_i32_1 = arith.constant 0 : i32
    return %c0_i32, %c0_i32_0 : i32, i32
  }
  func.func @transform_3(%arg0: i32, %arg1: i32) -> (i32, i32) {
    %c0_i32 = arith.constant 0 : i32
    %c0_i32_0 = arith.constant 0 : i32
    %c0_i32_1 = arith.constant 0 : i32
    return %c0_i32, %c0_i32_0 : i32, i32
  }
  func.func @transform_4(%arg0: i32, %arg1: i32) -> (i32, i32) {
    %c0_i32 = arith.constant 0 : i32
    %c0_i32_0 = arith.constant 0 : i32
    %c0_i32_1 = arith.constant 0 : i32
    return %c0_i32, %c0_i32_0 : i32, i32
  }
  func.func @transform_5(%arg0: i32, %arg1: i32) -> (i32, i32) {
    %c0_i32 = arith.constant 0 : i32
    %c0_i32_0 = arith.constant 0 : i32
    %c0_i32_1 = arith.constant 0 : i32
    return %c0_i32, %c0_i32_0 : i32, i32
  }
  func.func @transform_6(%arg0: i32, %arg1: i32) -> (i32, i32) {
    %c0_i32 = arith.constant 0 : i32
    %c0_i32_0 = arith.constant 0 : i32
    %c0_i32_1 = arith.constant 0 : i32
    return %c0_i32, %c0_i32_0 : i32, i32
  }
  func.func @transform_7(%arg0: i32, %arg1: i32) -> (i32, i32) {
    %c0_i32 = arith.constant 0 : i32
    %c0_i32_0 = arith.constant 0 : i32
    %c0_i32_1 = arith.constant 0 : i32
    return %c0_i32, %c0_i32_0 : i32, i32
  }
  func.func @transform_8(%arg0: i32, %arg1: i32) -> (i32, i32, i32) {
    %c0_i32 = arith.constant 0 : i32
    %c0_i32_0 = arith.constant 0 : i32
    return %arg0, %c0_i32, %arg1 : i32, i32, i32
  }
}

</mosaic_0001>

<llo_original>
// kernel: tpu_custom_call.1
$region0: #{tpu_custom_call.1}
  #allocation0 [shape = 'u32[]', space=smem, size = 0x4, offset = 0x4, fixed_abs, tag = 'smem constant byte address 0x4 - core index']
  #allocation1 [shape = 'u32[144,128]{1,0:T(1,128)}', space=vmem, size = 0x12000, scoped, tag = 'internal scratch']
  #allocation2 [shape = 'f32[1,8,512]{2,1,0:T(8,128)}', space=vmem, size = 0x4000, scoped, tag = 'scratch operand']
  %s0 = inlined_call_operand.vmem [shape: f32[1,8,256], index: 0, kind: input, shape index: {}]
  %s1 = inlined_call_operand.vmem [shape: f32[2,256], index: 1, kind: input, shape index: {}]
  %s2 = inlined_call_operand.vmem [shape: f32[8,9], index: 2, kind: input, shape index: {}]
  %s3 = inlined_call_operand.vmem [shape: f32[8,1], index: 3, kind: input, shape index: {}]
  %s4 = inlined_call_operand.vmem [shape: f32[8,1], index: 4, kind: input, shape index: {}]
  %s5 = inlined_call_operand.vmem [shape: f32[16,8], index: 5, kind: input, shape index: {}]
  %s6 = inlined_call_operand.vmem [shape: f32[16,1], index: 6, kind: input, shape index: {}]
  %s7 = inlined_call_operand.vmem [shape: f32[16,1], index: 7, kind: input, shape index: {}]
  %s8 = inlined_call_operand.hbm [shape: f32[1,16,256], index: 8, kind: output, shape index: {}]
  %s9 = sld [smem:[#allocation0]]
  $region46: #{tpu_custom_call.1} parent=0
    _
  %s11 = ssub.s32 1, %s9
  %s12 = scalar_select 0, %s11, %s9
  $region1: #{tpu_custom_call.1} parent=0
    #allocation3 [shape = 'u8[16384]{0}', space=vmem, size = 0x4000, scoped, tag = 'output window, operand 0, single buffered']
    #allocation4 [shape = 's32[1]{0}', space=sflag, size = 0x4, scoped, tag = 'scoped memory for tpu_custom_call.1']
    %13 = vsyncpa [#allocation4], 0
    // Predicated region
    $region2: #{tpu_custom_call.1} parent=1 // pred_check
      _
    $region3: #{tpu_custom_call.1} parent=1 // pred_check_branch
      %15 = sbr.rel (0) target = $region5
    $region4: #{tpu_custom_call.1} parent=1 // pred_region
      _
    $region5: #{tpu_custom_call.1} parent=1 // pred_fallthru
      _
    // Predicated region
    $region6: #{tpu_custom_call.1} parent=1 // pred_check
      _
    $region7: #{tpu_custom_call.1} parent=1 // pred_check_branch
      %17 = sbr.rel (0) target = $region9
    $region8: #{tpu_custom_call.1} parent=1 // pred_region
      _
    $region9: #{tpu_custom_call.1} parent=1 // pred_fallthru
      _
    // Predicated region
    $region10: #{tpu_custom_call.1} parent=1 // pred_check
      _
    $region11: #{tpu_custom_call.1} parent=1 // pred_check_branch
      %19 = sbr.rel (0) target = $region13
    $region12: #{tpu_custom_call.1} parent=1 // pred_region
      _
    $region13: #{tpu_custom_call.1} parent=1 // pred_fallthru
      _
    // Predicated region
    $region14: #{tpu_custom_call.1} parent=1 // pred_check
      _
    $region15: #{tpu_custom_call.1} parent=1 // pred_check_branch
      %21 = sbr.rel (0) target = $region17
    $region16: #{tpu_custom_call.1} parent=1 // pred_region
      _
    $region17: #{tpu_custom_call.1} parent=1 // pred_fallthru
      _
    // Predicated region
    $region18: #{tpu_custom_call.1} parent=1 // pred_check
      _
    $region19: #{tpu_custom_call.1} parent=1 // pred_check_branch
      %23 = sbr.rel (0) target = $region21
    $region20: #{tpu_custom_call.1} parent=1 // pred_region
      _
    $region21: #{tpu_custom_call.1} parent=1 // pred_fallthru
      _
    // Predicated region
    $region22: #{tpu_custom_call.1} parent=1 // pred_check
      _
    $region23: #{tpu_custom_call.1} parent=1 // pred_check_branch
      %25 = sbr.rel (0) target = $region25
    $region24: #{tpu_custom_call.1} parent=1 // pred_region
      _
    $region25: #{tpu_custom_call.1} parent=1 // pred_fallthru
      _
    // Predicated region
    $region26: #{tpu_custom_call.1} parent=1 // pred_check
      _
    $region27: #{tpu_custom_call.1} parent=1 // pred_check_branch
      %27 = sbr.rel (0) target = $region29
    $region28: #{tpu_custom_call.1} parent=1 // pred_region
      _
    $region29: #{tpu_custom_call.1} parent=1 // pred_fallthru
      _
    // Predicated region
    $region30: #{tpu_custom_call.1} parent=1 // pred_check
      _
    $region31: #{tpu_custom_call.1} parent=1 // pred_check_branch
      %29 = sbr.rel (0) target = $region33
    $region32: #{tpu_custom_call.1} parent=1 // pred_region
      _
    $region33: #{tpu_custom_call.1} parent=1 // pred_fallthru
      _
    %p30 = scmp.eq.s32.totalorder 0, 0
    // Predicated region
    $region34: #{tpu_custom_call.1} parent=1 // pred_check
      %p31 = pneg %p30
    $region35: #{tpu_custom_call.1} parent=1 // pred_check_branch
      %33 = sbr.rel (%p31) target = $region37
    $region36: #{tpu_custom_call.1} parent=1 // pred_region
      %34 = vst [vmem:[#allocation2] sm:$0xff] 0.0
      %v35 = vld [vmem:[%s0] sm:$0xff]
      %v36 = vld [vmem:[%s0 + $0x8] sm:$0xff]
      %37 = vst [vmem:[#allocation2 + $0x8] sm:$0xff] %v35
      %38 = vst [vmem:[#allocation2 + $0x10] sm:$0xff] %v36
      %39 = vst [vmem:[#allocation2 + $0x18] sm:$0xff] 0.0
    $region37: #{tpu_custom_call.1} parent=1 // pred_fallthru
      _
    %v40 = vld [vmem:[#allocation2] sm:$0xff]
    %v41 = vld [vmem:[#allocation2 + $0x8] sm:$0xff]
    %v42 = vld [vmem:[#allocation2 + $0x10] sm:$0xff]
    %v43 = vld [vmem:[#allocation2 + $0x18] sm:$0xff]
    %v44 = vld [vmem:[%s2] sm:$0xff]
    %46 = vset.pattern.permute.xlu0 0
    %47 = vperm.xlu0 %46, %v44
    %v48 = vpop.permute.xlu0 %47
    %v50 = vmul.f32 %v40, %v48
    %v51 = vmul.f32 %v41, %v48
    %v52 = vmul.f32 %v42, %v48
    %53 = vset.pattern.permute.xlu0 3
    %54 = vperm.xlu0 %53, %v44
    %v55 = vpop.permute.xlu0 %54
    %v57 = vmul.f32 %v40, %v55
    %v58 = vmul.f32 %v41, %v55
    %v59 = vmul.f32 %v42, %v55
    %63 = vrot.lane.b32.xlu0 %v57, 112
    %v64 = vpop.permute.xlu0 %63
    %65 = vrot.lane.b32.xlu0 %v58, 112
    %v66 = vpop.permute.xlu0 %65
    %67 = vrot.lane.b32.xlu0 %v59, 112
    %v68 = vpop.permute.xlu0 %67
    %vm69 = vcmask 916480
    %v70 = vsel %vm69, %v64, %v66
    %v71 = vsel %vm69, %v66, %v68
    %v75 = vadd.f32 %v50, %v70
    %v76 = vadd.f32 %v51, %v71
    %v77 = vadd.f32 %v52, %v68
    %78 = vset.pattern.permute.xlu0 6
    %79 = vperm.xlu0 %78, %v44
    %v80 = vpop.permute.xlu0 %79
    %v82 = vmul.f32 %v41, %v80
    %v83 = vmul.f32 %v42, %v80
    %v84 = vmul.f32 %v43, %v80
    %88 = vrot.lane.b32.xlu0 %v82, 96
    %v89 = vpop.permute.xlu0 %88
    %90 = vrot.lane.b32.xlu0 %v83, 96
    %v91 = vpop.permute.xlu0 %90
    %92 = vrot.lane.b32.xlu0 %v84, 96
    %v93 = vpop.permute.xlu0 %92
    %vm94 = vcmask 785408
    %v95 = vsel %vm94, %v89, %v91
    %v96 = vsel %vm94, %v91, %v93
    %v100 = vadd.f32 %v75, %v89
    %v101 = vadd.f32 %v76, %v95
    %v102 = vadd.f32 %v77, %v96
    %v103 = vld [vmem:[%s1] ss:$2 sm:$0x3]
    %v105 = vlaneseq
    %v106 = vshrl.u32 %v105, 7
    %v107 = vsub.s32 0, %v106
    %v108 = vrot.slane %v103, %v107
    %v109 = vlaneseq
    %v110 = vshrl.u32 %v109, 7
    %v111 = vsub.s32 1, %v110
    %v112 = vrot.slane %v103, %v111
    %113 = vrot.lane.b32.xlu0 %v108, 111
    %v114 = vpop.permute.xlu0 %113
    %115 = vrot.lane.b32.xlu0 %v112, 111
    %v116 = vpop.permute.xlu0 %115
    %vm117 = vcmask 908288
    %v118 = vsel %vm117, %v114, %v116
    %v122 = vmul.f32 %v100, %v114
    %v123 = vmul.f32 %v101, %v118
    %v124 = vmul.f32 %v102, %v116
    %125 = vset.pattern.permute.xlu0 1
    %126 = vperm.xlu0 %125, %v44
    %v127 = vpop.permute.xlu0 %126
    %v129 = vmul.f32 %v40, %v127
    %v130 = vmul.f32 %v41, %v127
    %v131 = vmul.f32 %v42, %v127
    %132 = vset.pattern.permute.xlu0 4
    %133 = vperm.xlu0 %132, %v44
    %v134 = vpop.permute.xlu0 %133
    %v136 = vmul.f32 %v41, %v134
    %v137 = vmul.f32 %v42, %v134
    %140 = vrot.lane.b32.xlu0 %v136, 112
    %v141 = vpop.permute.xlu0 %140
    %142 = vrot.lane.b32.xlu0 %v137, 112
    %v143 = vpop.permute.xlu0 %142
    %v144 = vsel %vm69, %v141, %v143
    %v148 = vadd.f32 %v129, %v141
    %v149 = vadd.f32 %v130, %v144
    %v150 = vadd.f32 %v131, %v143
    %151 = vset.pattern.permute.xlu0 7
    %152 = vperm.xlu0 %151, %v44
    %v153 = vpop.permute.xlu0 %152
    %v155 = vmul.f32 %v41, %v153
    %v156 = vmul.f32 %v42, %v153
    %v157 = vmul.f32 %v43, %v153
    %161 = vrot.lane.b32.xlu0 %v155, 96
    %v162 = vpop.permute.xlu0 %161
    %163 = vrot.lane.b32.xlu0 %v156, 96
    %v164 = vpop.permute.xlu0 %163
    %165 = vrot.lane.b32.xlu0 %v157, 96
    %v166 = vpop.permute.xlu0 %165
    %v167 = vsel %vm94, %v162, %v164
    %v168 = vsel %vm94, %v164, %v166
    %v172 = vadd.f32 %v148, %v162
    %v173 = vadd.f32 %v149, %v167
    %v174 = vadd.f32 %v150, %v168
    %178 = vrot.lane.b32.xlu0 %v172, 127
    %v179 = vpop.permute.xlu0 %178
    %180 = vrot.lane.b32.xlu0 %v173, 127
    %v181 = vpop.permute.xlu0 %180
    %182 = vrot.lane.b32.xlu0 %v174, 127
    %v183 = vpop.permute.xlu0 %182
    %vm184 = vcmask 1039360
    %v185 = vsel %vm184, %v179, %v181
    %v186 = vsel %vm184, %v181, %v183
    %v190 = vadd.f32 %v122, %v185
    %v191 = vadd.f32 %v123, %v186
    %v192 = vadd.f32 %v124, %v183
    %193 = vset.pattern.permute.xlu0 2
    %194 = vperm.xlu0 %193, %v44
    %v195 = vpop.permute.xlu0 %194
    %v197 = vmul.f32 %v40, %v195
    %v198 = vmul.f32 %v41, %v195
    %v199 = vmul.f32 %v42, %v195
    %200 = vset.pattern.permute.xlu0 5
    %201 = vperm.xlu0 %200, %v44
    %v202 = vpop.permute.xlu0 %201
    %v204 = vmul.f32 %v41, %v202
    %v205 = vmul.f32 %v42, %v202
    %v206 = vmul.f32 %v43, %v202
    %210 = vrot.lane.b32.xlu0 %v204, 112
    %v211 = vpop.permute.xlu0 %210
    %212 = vrot.lane.b32.xlu0 %v205, 112
    %v213 = vpop.permute.xlu0 %212
    %214 = vrot.lane.b32.xlu0 %v206, 112
    %v215 = vpop.permute.xlu0 %214
    %v216 = vsel %vm69, %v211, %v213
    %v217 = vsel %vm69, %v213, %v215
    %v221 = vadd.f32 %v197, %v211
    %v222 = vadd.f32 %v198, %v216
    %v223 = vadd.f32 %v199, %v217
    %224 = vset.pattern.permute.xlu0 8
    %225 = vperm.xlu0 %224, %v44
    %v226 = vpop.permute.xlu0 %225
    %v228 = vmul.f32 %v41, %v226
    %v229 = vmul.f32 %v42, %v226
    %v230 = vmul.f32 %v43, %v226
    %234 = vrot.lane.b32.xlu0 %v228, 96
    %v235 = vpop.permute.xlu0 %234
    %236 = vrot.lane.b32.xlu0 %v229, 96
    %v237 = vpop.permute.xlu0 %236
    %238 = vrot.lane.b32.xlu0 %v230, 96
    %v239 = vpop.permute.xlu0 %238
    %v240 = vsel %vm94, %v235, %v237
    %v241 = vsel %vm94, %v237, %v239
    %v245 = vadd.f32 %v221, %v235
    %v246 = vadd.f32 %v222, %v240
    %v247 = vadd.f32 %v223, %v241
    %s248 = scalar_lea.vmem %s1, 1
    %v249 = vld [vmem:[%s248] ss:$2 sm:$0x3]
    %v251 = vlaneseq
    %v252 = vshrl.u32 %v251, 7
    %v253 = vsub.s32 0, %v252
    %v254 = vrot.slane %v249, %v253
    %v255 = vlaneseq
    %v256 = vshrl.u32 %v255, 7
    %v257 = vsub.s32 1, %v256
    %v258 = vrot.slane %v249, %v257
    %259 = vrot.lane.b32.xlu0 %v254, 113
    %v260 = vpop.permute.xlu0 %259
    %261 = vrot.lane.b32.xlu0 %v258, 113
    %v262 = vpop.permute.xlu0 %261
    %vm263 = vcmask 924672
    %v264 = vsel %vm263, %v260, %v262
    %v268 = vmul.f32 %v245, %v260
    %v269 = vmul.f32 %v246, %v264
    %v270 = vmul.f32 %v247, %v262
    %274 = vrot.lane.b32.xlu0 %v268, 126
    %v275 = vpop.permute.xlu0 %274
    %276 = vrot.lane.b32.xlu0 %v269, 126
    %v277 = vpop.permute.xlu0 %276
    %278 = vrot.lane.b32.xlu0 %v270, 126
    %v279 = vpop.permute.xlu0 %278
    %vm280 = vcmask 1031168
    %v281 = vsel %vm280, %v275, %v277
    %v282 = vsel %vm280, %v277, %v279
    %v286 = vadd.f32 %v190, %v281
    %v287 = vadd.f32 %v191, %v282
    %v288 = vadd.f32 %v192, %v279
    %v289 = vld [vmem:[%s3] sm:$0xff]
    %291 = vset.pattern.permute.xlu0 0
    %292 = vperm.xlu0 %291, %v289
    %v293 = vpop.permute.xlu0 %292
    %v295 = vmul.f32 %v286, %v293
    %v296 = vmul.f32 %v287, %v293
    %v297 = vmul.f32 %v288, %v293
    %v298 = vld [vmem:[%s4] sm:$0xff]
    %300 = vset.pattern.permute.xlu0 0
    %301 = vperm.xlu0 %300, %v298
    %v302 = vpop.permute.xlu0 %301
    %v304 = vadd.f32 %v295, %v302
    %v305 = vadd.f32 %v296, %v302
    %v306 = vadd.f32 %v297, %v302
    %v307 = vmax.f32 %v304, 0.0
    %v308 = vmax.f32 %v305, 0.0
    %v309 = vmax.f32 %v306, 0.0
    %v310 = vld [vmem:[%s5] sm:$0xff]
    %v311 = vld [vmem:[%s5 + $0x8] sm:$0xff]
    %315 = vrot.lane.b32.xlu0 %v307, 17
    %v316 = vpop.permute.xlu0 %315
    %317 = vrot.lane.b32.xlu0 %v308, 17
    %v318 = vpop.permute.xlu0 %317
    %319 = vrot.lane.b32.xlu0 %v309, 17
    %v320 = vpop.permute.xlu0 %319
    %vm321 = vcmask 138240
    %v322 = vsel %vm321, %v316, %v318
    %v323 = vsel %vm321, %v318, %v320
    %vm326 = vcmask 64512
    %v328 = vsel %vm326, %v310, 0
    %v331 = vsel %vm326, %v311, 0
    %333 = vmatprep.subr.mxu0 0.0
    %334 = vmatpush1.msra.mxu0 0.0
    %335 = vmatprep.subr.mxu0 0.0
    %336 = vmatpush1.msra.mxu0 0.0
    %337 = vmatprep.subr.mxu0 0.0
    %338 = vmatpush1.msra.mxu0 0.0
    %339 = vmatprep.subr.mxu0 0.0
    %340 = vmatpush1.msra.mxu0 0.0
    %341 = vmatprep.subr.mxu0 0.0
    %342 = vmatpush1.msra.mxu0 0.0
    %343 = vmatprep.subr.mxu0 0.0
    %344 = vmatpush1.msra.mxu0 0.0
    %345 = vmatprep.subr.mxu0 0.0
    %346 = vmatpush1.msra.mxu0 0.0
    %347 = vmatprep.subr.mxu0 0.0
    %348 = vmatpush1.msra.mxu0 0.0
    %349 = vmatprep.subr.mxu0 0.0
    %350 = vmatpush1.msra.mxu0 0.0
    %351 = vmatprep.subr.mxu0 0.0
    %352 = vmatpush1.msra.mxu0 0.0
    %353 = vmatprep.subr.mxu0 0.0
    %354 = vmatpush1.msra.mxu0 0.0
    %355 = vmatprep.subr.mxu0 0.0
    %356 = vmatpush1.msra.mxu0 0.0
    %357 = vmatprep.subr.mxu0 0.0
    %358 = vmatpush1.msra.mxu0 0.0
    %359 = vmatprep.subr.mxu0 0.0
    %360 = vmatpush1.msra.mxu0 0.0
    %361 = vmatprep.subr.mxu0 0.0
    %362 = vmatpush1.msra.mxu0 0.0
    %v363 = vand.u32 %v323, 4294901760
    %364 = vmatprep.subr.mxu0 %v363
    %v365 = vand.u32 %v322, 4294901760
    %366 = vmatpush1.msra.mxu0 %v365
    %367 = vmatprep.subr.mxu0 0.0
    %368 = vmatpush2.msra.mxu0 0.0
    %369 = vmatprep.subr.mxu0 0.0
    %370 = vmatpush2.msra.mxu0 0.0
    %371 = vmatprep.subr.mxu0 0.0
    %372 = vmatpush2.msra.mxu0 0.0
    %373 = vmatprep.subr.mxu0 0.0
    %374 = vmatpush2.msra.mxu0 0.0
    %375 = vmatprep.subr.mxu0 0.0
    %376 = vmatpush2.msra.mxu0 0.0
    %377 = vmatprep.subr.mxu0 0.0
    %378 = vmatpush2.msra.mxu0 0.0
    %379 = vmatprep.subr.mxu0 0.0
    %380 = vmatpush2.msra.mxu0 0.0
    %381 = vmatprep.subr.mxu0 0.0
    %382 = vmatpush2.msra.mxu0 0.0
    %383 = vmatprep.subr.mxu0 0.0
    %384 = vmatpush2.msra.mxu0 0.0
    %385 = vmatprep.subr.mxu0 0.0
    %386 = vmatpush2.msra.mxu0 0.0
    %387 = vmatprep.subr.mxu0 0.0
    %388 = vmatpush2.msra.mxu0 0.0
    %389 = vmatprep.subr.mxu0 0.0
    %390 = vmatpush2.msra.mxu0 0.0
    %391 = vmatprep.subr.mxu0 0.0
    %392 = vmatpush2.msra.mxu0 0.0
    %393 = vmatprep.subr.mxu0 0.0
    %394 = vmatpush2.msra.mxu0 0.0
    %395 = vmatprep.subr.mxu0 0.0
    %396 = vmatpush2.msra.mxu0 0.0
    %397 = vmatprep.subr.mxu0 0.0
    %398 = vmatpush2.msra.mxu0 0.0
    %399 = vmatprep.mubr.f32.mxu0 0.0
    %v400 = vand.u32 %v328, 4294901760
    %v401 = vsub.f32 %v328, %v400
    %v402 = vand.u32 %v401, 4294901760
    %v403 = vsub.f32 %v401, %v402
    %v404 = vand.u32 %v403, 4294901760
    %405 = vmatmul.mubr.f32.gmra.mxu0 %v404
    %v406 = vpop.f32.mrf.mxu0
    %v407 = vadd.f32 0.0, %v406
    %v408 = vpop.f32.mrf.mxu0
    %v409 = vadd.f32 0.0, %v408
    %410 = vmatprep.mubr.f32.mxu0 0.0
    %v411 = vand.u32 %v331, 4294901760
    %v412 = vsub.f32 %v331, %v411
    %v413 = vand.u32 %v412, 4294901760
    %v414 = vsub.f32 %v412, %v413
    %v415 = vand.u32 %v414, 4294901760
    %416 = vmatmul.mubr.f32.gmra.mxu0 %v415
    %v417 = vpop.f32.mrf.mxu0
    %v418 = vadd.f32 0.0, %v417
    %v419 = vpop.f32.mrf.mxu0
    %v420 = vadd.f32 0.0, %v419
    %421 = vdwg.mxu0
    %422 = vmatprep.subr.mxu0 0.0
    %423 = vmatpush1.msra.mxu0 0.0
    %424 = vmatprep.subr.mxu0 0.0
    %425 = vmatpush1.msra.mxu0 0.0
    %426 = vmatprep.subr.mxu0 0.0
    %427 = vmatpush1.msra.mxu0 0.0
    %428 = vmatprep.subr.mxu0 0.0
    %429 = vmatpush1.msra.mxu0 0.0
    %430 = vmatprep.subr.mxu0 0.0
    %431 = vmatpush1.msra.mxu0 0.0
    %432 = vmatprep.subr.mxu0 0.0
    %433 = vmatpush1.msra.mxu0 0.0
    %434 = vmatprep.subr.mxu0 0.0
    %435 = vmatpush1.msra.mxu0 0.0
    %436 = vmatprep.subr.mxu0 0.0
    %437 = vmatpush1.msra.mxu0 0.0
    %438 = vmatprep.subr.mxu0 0.0
    %439 = vmatpush1.msra.mxu0 0.0
    %440 = vmatprep.subr.mxu0 0.0
    %441 = vmatpush1.msra.mxu0 0.0
    %442 = vmatprep.subr.mxu0 0.0
    %443 = vmatpush1.msra.mxu0 0.0
    %444 = vmatprep.subr.mxu0 0.0
    %445 = vmatpush1.msra.mxu0 0.0
    %446 = vmatprep.subr.mxu0 0.0
    %447 = vmatpush1.msra.mxu0 0.0
    %448 = vmatprep.subr.mxu0 0.0
    %449 = vmatpush1.msra.mxu0 0.0
    %450 = vmatprep.subr.mxu0 0.0
    %451 = vmatpush1.msra.mxu0 0.0
    %v452 = vand.u32 %v323, 4294901760
    %v453 = vsub.f32 %v323, %v452
    %v454 = vand.u32 %v453, 4294901760
    %v455 = vsub.f32 %v453, %v454
    %v456 = vand.u32 %v455, 4294901760
    %457 = vmatprep.subr.mxu0 %v456
    %v458 = vand.u32 %v322, 4294901760
    %v459 = vsub.f32 %v322, %v458
    %v460 = vand.u32 %v459, 4294901760
    %v461 = vsub.f32 %v459, %v460
    %v462 = vand.u32 %v461, 4294901760
    %463 = vmatpush1.msra.mxu0 %v462
    %464 = vmatprep.subr.mxu0 0.0
    %465 = vmatpush2.msra.mxu0 0.0
    %466 = vmatprep.subr.mxu0 0.0
    %467 = vmatpush2.msra.mxu0 0.0
    %468 = vmatprep.subr.mxu0 0.0
    %469 = vmatpush2.msra.mxu0 0.0
    %470 = vmatprep.subr.mxu0 0.0
    %471 = vmatpush2.msra.mxu0 0.0
    %472 = vmatprep.subr.mxu0 0.0
    %473 = vmatpush2.msra.mxu0 0.0
    %474 = vmatprep.subr.mxu0 0.0
    %475 = vmatpush2.msra.mxu0 0.0
    %476 = vmatprep.subr.mxu0 0.0
    %477 = vmatpush2.msra.mxu0 0.0
    %478 = vmatprep.subr.mxu0 0.0
    %479 = vmatpush2.msra.mxu0 0.0
    %480 = vmatprep.subr.mxu0 0.0
    %481 = vmatpush2.msra.mxu0 0.0
    %482 = vmatprep.subr.mxu0 0.0
    %483 = vmatpush2.msra.mxu0 0.0
    %484 = vmatprep.subr.mxu0 0.0
    %485 = vmatpush2.msra.mxu0 0.0
    %486 = vmatprep.subr.mxu0 0.0
    %487 = vmatpush2.msra.mxu0 0.0
    %488 = vmatprep.subr.mxu0 0.0
    %489 = vmatpush2.msra.mxu0 0.0
    %490 = vmatprep.subr.mxu0 0.0
    %491 = vmatpush2.msra.mxu0 0.0
    %492 = vmatprep.subr.mxu0 0.0
    %493 = vmatpush2.msra.mxu0 0.0
    %494 = vmatprep.subr.mxu0 0.0
    %495 = vmatpush2.msra.mxu0 0.0
    %496 = vmatprep.mubr.f32.mxu0 0.0
    %v497 = vand.u32 %v328, 4294901760
    %498 = vmatmul.mubr.f32.gmra.mxu0 %v497
    %v499 = vpop.f32.mrf.mxu0
    %v500 = vadd.f32 %v407, %v499
    %v501 = vpop.f32.mrf.mxu0
    %v502 = vadd.f32 %v409, %v501
    %503 = vmatprep.mubr.f32.mxu0 0.0
    %v504 = vand.u32 %v331, 4294901760
    %505 = vmatmul.mubr.f32.gmra.mxu0 %v504
    %v506 = vpop.f32.mrf.mxu0
    %v507 = vadd.f32 %v418, %v506
    %v508 = vpop.f32.mrf.mxu0
    %v509 = vadd.f32 %v420, %v508
    %510 = vdwg.mxu0
    %511 = vmatprep.subr.mxu0 0.0
    %512 = vmatpush1.msra.mxu0 0.0
    %513 = vmatprep.subr.mxu0 0.0
    %514 = vmatpush1.msra.mxu0 0.0
    %515 = vmatprep.subr.mxu0 0.0
    %516 = vmatpush1.msra.mxu0 0.0
    %517 = vmatprep.subr.mxu0 0.0
    %518 = vmatpush1.msra.mxu0 0.0
    %519 = vmatprep.subr.mxu0 0.0
    %520 = vmatpush1.msra.mxu0 0.0
    %521 = vmatprep.subr.mxu0 0.0
    %522 = vmatpush1.msra.mxu0 0.0
    %523 = vmatprep.subr.mxu0 0.0
    %524 = vmatpush1.msra.mxu0 0.0
    %525 = vmatprep.subr.mxu0 0.0
    %526 = vmatpush1.msra.mxu0 0.0
    %527 = vmatprep.subr.mxu0 0.0
    %528 = vmatpush1.msra.mxu0 0.0
    %529 = vmatprep.subr.mxu0 0.0
    %530 = vmatpush1.msra.mxu0 0.0
    %531 = vmatprep.subr.mxu0 0.0
    %532 = vmatpush1.msra.mxu0 0.0
    %533 = vmatprep.subr.mxu0 0.0
    %534 = vmatpush1.msra.mxu0 0.0
    %535 = vmatprep.subr.mxu0 0.0
    %536 = vmatpush1.msra.mxu0 0.0
    %537 = vmatprep.subr.mxu0 0.0
    %538 = vmatpush1.msra.mxu0 0.0
    %539 = vmatprep.subr.mxu0 0.0
    %540 = vmatpush1.msra.mxu0 0.0
    %v541 = vand.u32 %v323, 4294901760
    %v542 = vsub.f32 %v323, %v541
    %543 = vmatprep.subr.mxu0 %v542
    %v544 = vand.u32 %v322, 4294901760
    %v545 = vsub.f32 %v322, %v544
    %546 = vmatpush1.msra.mxu0 %v545
    %547 = vmatprep.subr.mxu0 0.0
    %548 = vmatpush2.msra.mxu0 0.0
    %549 = vmatprep.subr.mxu0 0.0
    %550 = vmatpush2.msra.mxu0 0.0
    %551 = vmatprep.subr.mxu0 0.0
    %552 = vmatpush2.msra.mxu0 0.0
    %553 = vmatprep.subr.mxu0 0.0
    %554 = vmatpush2.msra.mxu0 0.0
    %555 = vmatprep.subr.mxu0 0.0
    %556 = vmatpush2.msra.mxu0 0.0
    %557 = vmatprep.subr.mxu0 0.0
    %558 = vmatpush2.msra.mxu0 0.0
    %559 = vmatprep.subr.mxu0 0.0
    %560 = vmatpush2.msra.mxu0 0.0
    %561 = vmatprep.subr.mxu0 0.0
    %562 = vmatpush2.msra.mxu0 0.0
    %563 = vmatprep.subr.mxu0 0.0
    %564 = vmatpush2.msra.mxu0 0.0
    %565 = vmatprep.subr.mxu0 0.0
    %566 = vmatpush2.msra.mxu0 0.0
    %567 = vmatprep.subr.mxu0 0.0
    %568 = vmatpush2.msra.mxu0 0.0
    %569 = vmatprep.subr.mxu0 0.0
    %570 = vmatpush2.msra.mxu0 0.0
    %571 = vmatprep.subr.mxu0 0.0
    %572 = vmatpush2.msra.mxu0 0.0
    %573 = vmatprep.subr.mxu0 0.0
    %574 = vmatpush2.msra.mxu0 0.0
    %575 = vmatprep.subr.mxu0 0.0
    %576 = vmatpush2.msra.mxu0 0.0
    %577 = vmatprep.subr.mxu0 0.0
    %578 = vmatpush2.msra.mxu0 0.0
    %579 = vmatprep.mubr.f32.mxu0 0.0
    %v580 = vand.u32 %v328, 4294901760
    %v581 = vsub.f32 %v328, %v580
    %582 = vmatmul.mubr.f32.gmra.mxu0 %v581
    %v583 = vpop.f32.mrf.mxu0
    %v584 = vadd.f32 %v500, %v583
    %v585 = vpop.f32.mrf.mxu0
    %v586 = vadd.f32 %v502, %v585
    %587 = vmatprep.mubr.f32.mxu0 0.0
    %v588 = vand.u32 %v331, 4294901760
    %v589 = vsub.f32 %v331, %v588
    %590 = vmatmul.mubr.f32.gmra.mxu0 %v589
    %v591 = vpop.f32.mrf.mxu0
    %v592 = vadd.f32 %v507, %v591
    %v593 = vpop.f32.mrf.mxu0
    %v594 = vadd.f32 %v509, %v593
    %595 = vdwg.mxu0
    %596 = vmatprep.subr.mxu0 0.0
    %597 = vmatpush1.msra.mxu0 0.0
    %598 = vmatprep.subr.mxu0 0.0
    %599 = vmatpush1.msra.mxu0 0.0
    %600 = vmatprep.subr.mxu0 0.0
    %601 = vmatpush1.msra.mxu0 0.0
    %602 = vmatprep.subr.mxu0 0.0
    %603 = vmatpush1.msra.mxu0 0.0
    %604 = vmatprep.subr.mxu0 0.0
    %605 = vmatpush1.msra.mxu0 0.0
    %606 = vmatprep.subr.mxu0 0.0
    %607 = vmatpush1.msra.mxu0 0.0
    %608 = vmatprep.subr.mxu0 0.0
    %609 = vmatpush1.msra.mxu0 0.0
    %610 = vmatprep.subr.mxu0 0.0
    %611 = vmatpush1.msra.mxu0 0.0
    %612 = vmatprep.subr.mxu0 0.0
    %613 = vmatpush1.msra.mxu0 0.0
    %614 = vmatprep.subr.mxu0 0.0
    %615 = vmatpush1.msra.mxu0 0.0
    %616 = vmatprep.subr.mxu0 0.0
    %617 = vmatpush1.msra.mxu0 0.0
    %618 = vmatprep.subr.mxu0 0.0
    %619 = vmatpush1.msra.mxu0 0.0
    %620 = vmatprep.subr.mxu0 0.0
    %621 = vmatpush1.msra.mxu0 0.0
    %622 = vmatprep.subr.mxu0 0.0
    %623 = vmatpush1.msra.mxu0 0.0
    %624 = vmatprep.subr.mxu0 0.0
    %625 = vmatpush1.msra.mxu0 0.0
    %v626 = vand.u32 %v323, 4294901760
    %627 = vmatprep.subr.mxu0 %v626
    %v628 = vand.u32 %v322, 4294901760
    %629 = vmatpush1.msra.mxu0 %v628
    %630 = vmatprep.subr.mxu0 0.0
    %631 = vmatpush2.msra.mxu0 0.0
    %632 = vmatprep.subr.mxu0 0.0
    %633 = vmatpush2.msra.mxu0 0.0
    %634 = vmatprep.subr.mxu0 0.0
    %635 = vmatpush2.msra.mxu0 0.0
    %636 = vmatprep.subr.mxu0 0.0
    %637 = vmatpush2.msra.mxu0 0.0
    %638 = vmatprep.subr.mxu0 0.0
    %639 = vmatpush2.msra.mxu0 0.0
    %640 = vmatprep.subr.mxu0 0.0
    %641 = vmatpush2.msra.mxu0 0.0
    %642 = vmatprep.subr.mxu0 0.0
    %643 = vmatpush2.msra.mxu0 0.0
    %644 = vmatprep.subr.mxu0 0.0
    %645 = vmatpush2.msra.mxu0 0.0
    %646 = vmatprep.subr.mxu0 0.0
    %647 = vmatpush2.msra.mxu0 0.0
    %648 = vmatprep.subr.mxu0 0.0
    %649 = vmatpush2.msra.mxu0 0.0
    %650 = vmatprep.subr.mxu0 0.0
    %651 = vmatpush2.msra.mxu0 0.0
    %652 = vmatprep.subr.mxu0 0.0
    %653 = vmatpush2.msra.mxu0 0.0
    %654 = vmatprep.subr.mxu0 0.0
    %655 = vmatpush2.msra.mxu0 0.0
    %656 = vmatprep.subr.mxu0 0.0
    %657 = vmatpush2.msra.mxu0 0.0
    %658 = vmatprep.subr.mxu0 0.0
    %659 = vmatpush2.msra.mxu0 0.0
    %660 = vmatprep.subr.mxu0 0.0
    %661 = vmatpush2.msra.mxu0 0.0
    %662 = vmatprep.mubr.f32.mxu0 0.0
    %v663 = vand.u32 %v328, 4294901760
    %v664 = vsub.f32 %v328, %v663
    %v665 = vand.u32 %v664, 4294901760
    %666 = vmatmul.mubr.f32.gmra.mxu0 %v665
    %v667 = vpop.f32.mrf.mxu0
    %v668 = vadd.f32 %v584, %v667
    %v669 = vpop.f32.mrf.mxu0
    %v670 = vadd.f32 %v586, %v669
    %671 = vmatprep.mubr.f32.mxu0 0.0
    %v672 = vand.u32 %v331, 4294901760
    %v673 = vsub.f32 %v331, %v672
    %v674 = vand.u32 %v673, 4294901760
    %675 = vmatmul.mubr.f32.gmra.mxu0 %v674
    %v676 = vpop.f32.mrf.mxu0
    %v677 = vadd.f32 %v592, %v676
    %v678 = vpop.f32.mrf.mxu0
    %v679 = vadd.f32 %v594, %v678
    %680 = vdwg.mxu0
    %681 = vmatprep.subr.mxu0 0.0
    %682 = vmatpush1.msra.mxu0 0.0
    %683 = vmatprep.subr.mxu0 0.0
    %684 = vmatpush1.msra.mxu0 0.0
    %685 = vmatprep.subr.mxu0 0.0
    %686 = vmatpush1.msra.mxu0 0.0
    %687 = vmatprep.subr.mxu0 0.0
    %688 = vmatpush1.msra.mxu0 0.0
    %689 = vmatprep.subr.mxu0 0.0
    %690 = vmatpush1.msra.mxu0 0.0
    %691 = vmatprep.subr.mxu0 0.0
    %692 = vmatpush1.msra.mxu0 0.0
    %693 = vmatprep.subr.mxu0 0.0
    %694 = vmatpush1.msra.mxu0 0.0
    %695 = vmatprep.subr.mxu0 0.0
    %696 = vmatpush1.msra.mxu0 0.0
    %697 = vmatprep.subr.mxu0 0.0
    %698 = vmatpush1.msra.mxu0 0.0
    %699 = vmatprep.subr.mxu0 0.0
    %700 = vmatpush1.msra.mxu0 0.0
    %701 = vmatprep.subr.mxu0 0.0
    %702 = vmatpush1.msra.mxu0 0.0
    %703 = vmatprep.subr.mxu0 0.0
    %704 = vmatpush1.msra.mxu0 0.0
    %705 = vmatprep.subr.mxu0 0.0
    %706 = vmatpush1.msra.mxu0 0.0
    %707 = vmatprep.subr.mxu0 0.0
    %708 = vmatpush1.msra.mxu0 0.0
    %709 = vmatprep.subr.mxu0 0.0
    %710 = vmatpush1.msra.mxu0 0.0
    %v711 = vand.u32 %v323, 4294901760
    %v712 = vsub.f32 %v323, %v711
    %v713 = vand.u32 %v712, 4294901760
    %714 = vmatprep.subr.mxu0 %v713
    %v715 = vand.u32 %v322, 4294901760
    %v716 = vsub.f32 %v322, %v715
    %v717 = vand.u32 %v716, 4294901760
    %718 = vmatpush1.msra.mxu0 %v717
    %719 = vmatprep.subr.mxu0 0.0
    %720 = vmatpush2.msra.mxu0 0.0
    %721 = vmatprep.subr.mxu0 0.0
    %722 = vmatpush2.msra.mxu0 0.0
    %723 = vmatprep.subr.mxu0 0.0
    %724 = vmatpush2.msra.mxu0 0.0
    %725 = vmatprep.subr.mxu0 0.0
    %726 = vmatpush2.msra.mxu0 0.0
    %727 = vmatprep.subr.mxu0 0.0
    %728 = vmatpush2.msra.mxu0 0.0
    %729 = vmatprep.subr.mxu0 0.0
    %730 = vmatpush2.msra.mxu0 0.0
    %731 = vmatprep.subr.mxu0 0.0
    %732 = vmatpush2.msra.mxu0 0.0
    %733 = vmatprep.subr.mxu0 0.0
    %734 = vmatpush2.msra.mxu0 0.0
    %735 = vmatprep.subr.mxu0 0.0
    %736 = vmatpush2.msra.mxu0 0.0
    %737 = vmatprep.subr.mxu0 0.0
    %738 = vmatpush2.msra.mxu0 0.0
    %739 = vmatprep.subr.mxu0 0.0
    %740 = vmatpush2.msra.mxu0 0.0
    %741 = vmatprep.subr.mxu0 0.0
    %742 = vmatpush2.msra.mxu0 0.0
    %743 = vmatprep.subr.mxu0 0.0
    %744 = vmatpush2.msra.mxu0 0.0
    %745 = vmatprep.subr.mxu0 0.0
    %746 = vmatpush2.msra.mxu0 0.0
    %747 = vmatprep.subr.mxu0 0.0
    %748 = vmatpush2.msra.mxu0 0.0
    %749 = vmatprep.subr.mxu0 0.0
    %750 = vmatpush2.msra.mxu0 0.0
    %751 = vmatprep.mubr.f32.mxu0 0.0
    %v752 = vand.u32 %v328, 4294901760
    %753 = vmatmul.mubr.f32.gmra.mxu0 %v752
    %v754 = vpop.f32.mrf.mxu0
    %v755 = vadd.f32 %v668, %v754
    %v756 = vpop.f32.mrf.mxu0
    %v757 = vadd.f32 %v670, %v756
    %758 = vmatprep.mubr.f32.mxu0 0.0
    %v759 = vand.u32 %v331, 4294901760
    %760 = vmatmul.mubr.f32.gmra.mxu0 %v759
    %v761 = vpop.f32.mrf.mxu0
    %v762 = vadd.f32 %v677, %v761
    %v763 = vpop.f32.mrf.mxu0
    %v764 = vadd.f32 %v679, %v763
    %765 = vdwg.mxu0
    %766 = vmatprep.subr.mxu0 0.0
    %767 = vmatpush1.msra.mxu0 0.0
    %768 = vmatprep.subr.mxu0 0.0
    %769 = vmatpush1.msra.mxu0 0.0
    %770 = vmatprep.subr.mxu0 0.0
    %771 = vmatpush1.msra.mxu0 0.0
    %772 = vmatprep.subr.mxu0 0.0
    %773 = vmatpush1.msra.mxu0 0.0
    %774 = vmatprep.subr.mxu0 0.0
    %775 = vmatpush1.msra.mxu0 0.0
    %776 = vmatprep.subr.mxu0 0.0
    %777 = vmatpush1.msra.mxu0 0.0
    %778 = vmatprep.subr.mxu0 0.0
    %779 = vmatpush1.msra.mxu0 0.0
    %780 = vmatprep.subr.mxu0 0.0
    %781 = vmatpush1.msra.mxu0 0.0
    %782 = vmatprep.subr.mxu0 0.0
    %783 = vmatpush1.msra.mxu0 0.0
    %784 = vmatprep.subr.mxu0 0.0
    %785 = vmatpush1.msra.mxu0 0.0
    %786 = vmatprep.subr.mxu0 0.0
    %787 = vmatpush1.msra.mxu0 0.0
    %788 = vmatprep.subr.mxu0 0.0
    %789 = vmatpush1.msra.mxu0 0.0
    %790 = vmatprep.subr.mxu0 0.0
    %791 = vmatpush1.msra.mxu0 0.0
    %792 = vmatprep.subr.mxu0 0.0
    %793 = vmatpush1.msra.mxu0 0.0
    %794 = vmatprep.subr.mxu0 0.0
    %795 = vmatpush1.msra.mxu0 0.0
    %v796 = vand.u32 %v323, 4294901760
    %797 = vmatprep.subr.mxu0 %v796
    %v798 = vand.u32 %v322, 4294901760
    %799 = vmatpush1.msra.mxu0 %v798
    %800 = vmatprep.subr.mxu0 0.0
    %801 = vmatpush2.msra.mxu0 0.0
    %802 = vmatprep.subr.mxu0 0.0
    %803 = vmatpush2.msra.mxu0 0.0
    %804 = vmatprep.subr.mxu0 0.0
    %805 = vmatpush2.msra.mxu0 0.0
    %806 = vmatprep.subr.mxu0 0.0
    %807 = vmatpush2.msra.mxu0 0.0
    %808 = vmatprep.subr.mxu0 0.0
    %809 = vmatpush2.msra.mxu0 0.0
    %810 = vmatprep.subr.mxu0 0.0
    %811 = vmatpush2.msra.mxu0 0.0
    %812 = vmatprep.subr.mxu0 0.0
    %813 = vmatpush2.msra.mxu0 0.0
    %814 = vmatprep.subr.mxu0 0.0
    %815 = vmatpush2.msra.mxu0 0.0
    %816 = vmatprep.subr.mxu0 0.0
    %817 = vmatpush2.msra.mxu0 0.0
    %818 = vmatprep.subr.mxu0 0.0
    %819 = vmatpush2.msra.mxu0 0.0
    %820 = vmatprep.subr.mxu0 0.0
    %821 = vmatpush2.msra.mxu0 0.0
    %822 = vmatprep.subr.mxu0 0.0
    %823 = vmatpush2.msra.mxu0 0.0
    %824 = vmatprep.subr.mxu0 0.0
    %825 = vmatpush2.msra.mxu0 0.0
    %826 = vmatprep.subr.mxu0 0.0
    %827 = vmatpush2.msra.mxu0 0.0
    %828 = vmatprep.subr.mxu0 0.0
    %829 = vmatpush2.msra.mxu0 0.0
    %830 = vmatprep.subr.mxu0 0.0
    %831 = vmatpush2.msra.mxu0 0.0
    %832 = vmatprep.mubr.f32.mxu0 0.0
    %v833 = vand.u32 %v328, 4294901760
    %834 = vmatmul.mubr.f32.gmra.mxu0 %v833
    %v835 = vpop.f32.mrf.mxu0
    %v836 = vadd.f32 %v755, %v835
    %v837 = vpop.f32.mrf.mxu0
    %v838 = vadd.f32 %v757, %v837
    %839 = vmatprep.mubr.f32.mxu0 0.0
    %v840 = vand.u32 %v331, 4294901760
    %841 = vmatmul.mubr.f32.gmra.mxu0 %v840
    %v842 = vpop.f32.mrf.mxu0
    %v843 = vadd.f32 %v762, %v842
    %v844 = vpop.f32.mrf.mxu0
    %v845 = vadd.f32 %v764, %v844
    %846 = vdwg.mxu0
    %v847 = vld [vmem:[%s6] sm:$0xff]
    %v848 = vld [vmem:[%s6 + $0x8] sm:$0xff]
    %850 = vset.pattern.permute.xlu0 0
    %851 = vperm.xlu0 %850, %v847
    %v852 = vpop.permute.xlu0 %851
    %855 = vset.pattern.permute.xlu0 0
    %856 = vperm.xlu0 %855, %v848
    %v857 = vpop.permute.xlu0 %856
    %v859 = vmul.f32 %v836, %v852
    %v860 = vmul.f32 %v838, %v852
    %v861 = vmul.f32 %v843, %v857
    %v862 = vmul.f32 %v845, %v857
    %v863 = vld [vmem:[%s7] sm:$0xff]
    %v864 = vld [vmem:[%s7 + $0x8] sm:$0xff]
    %866 = vset.pattern.permute.xlu0 0
    %867 = vperm.xlu0 %866, %v863
    %v868 = vpop.permute.xlu0 %867
    %871 = vset.pattern.permute.xlu0 0
    %872 = vperm.xlu0 %871, %v864
    %v873 = vpop.permute.xlu0 %872
    %v875 = vadd.f32 %v859, %v868
    %v876 = vadd.f32 %v860, %v868
    %v877 = vadd.f32 %v861, %v873
    %v878 = vadd.f32 %v862, %v873
    %v879 = vmax.f32 %v875, 0.0
    %v880 = vmax.f32 %v876, 0.0
    %v881 = vmax.f32 %v877, 0.0
    %v882 = vmax.f32 %v878, 0.0
    %883 = vst [vmem:[#allocation3] sm:$0xff] %v879
    %884 = vst [vmem:[#allocation3 + $0x8] sm:$0xff] %v880
    %885 = vst [vmem:[#allocation3 + $0x10] sm:$0xff] %v881
    %886 = vst [vmem:[#allocation3 + $0x18] sm:$0xff] %v882
    // Predicated region
    $region38: #{tpu_custom_call.1} parent=1 // pred_check
      _
    $region39: #{tpu_custom_call.1} parent=1 // pred_check_branch
      %888 = sbr.rel (0) target = $region41
    $region40: #{tpu_custom_call.1} parent=1 // pred_region
      %s890 = ssub.s32 512, 512
      %891 = vsyncadd [#allocation4], %s890
      %s892 = sshll.u32 [#allocation3], 4
      %s893 = int_to_ptr.vmem [resolvable:$true] %s892
      %898 = dma.vmem_to_hbm [thread:$0]  %s893, 512, %s8, [#allocation4], 256, 256, 16
    $region41: #{tpu_custom_call.1} parent=1 // pred_fallthru
      _
    // Predicated region
    $region42: #{tpu_custom_call.1} parent=1 // pred_check
      _
    $region43: #{tpu_custom_call.1} parent=1 // pred_check_branch
      %900 = sbr.rel (0) target = $region45
    $region44: #{tpu_custom_call.1} parent=1 // pred_region
      %901 = dma.done [#allocation4], 512
    $region45: #{tpu_custom_call.1} parent=1 // pred_fallthru
      _
    %902 = vsyncpa [#allocation4], 1

</llo_original>
